<compile_context>
chip_gen: v5e
topology: v5e:2x2
jax: 0.10.0
libtpu: 0.0.40
codegen_flags: <defaults>
</compile_context>

<pallas_src>
from functools import partial

import jax
import jax.numpy as jnp
from jax.experimental import pallas as pl
from jax.experimental.pallas import tpu as pltpu

SUBLANE = 8
LANE = 128


def _round_up(x, m):
    return pl.cdiv(x, m) * m


# ------------------------------------------------------------------ kernel --
def _mlp_kernel(x_ref, p_ref, o_ref, *, state_size, s_rows, h_pad):
    """Fused 3-layer MLP on one (tb, state_size) batch tile.

    x_ref: (tb, state_size)   raw input features (no padding copy)
    p_ref: (s_rows + 8 + 2*h_pad, LANE) packed parameter slab
        rows [0, state_size)            : W1  (cols 0:hidden)
        row  s_rows                     : b1  (cols 0:hidden), col hidden = 1.0
        rows [s_rows+8, +h_pad)         : W2  (rows 0:hidden), row hidden = b2,
                                          [hidden, hidden] = 1.0
        rows [s_rows+8+h_pad, +h_pad)   : W3  (rows 0:hidden), row hidden = b3
    o_ref: (tb, LANE)         lane-dense output (cols >= action_size are 0)
    """
    b1_off = s_rows
    w2_off = s_rows + SUBLANE
    w3_off = w2_off + h_pad

    x = x_ref[...]                                   # (tb, state_size)
    w1 = p_ref[0:state_size, :]                      # (state_size, 128)
    b1 = p_ref[b1_off:b1_off + 1, :]                 # (1, 128), aligned row
    w2 = p_ref[w2_off:w2_off + h_pad, :]             # (32, 128), b2 folded in
    w3 = p_ref[w3_off:w3_off + h_pad, :]             # (32, 128), b3 folded in

    # Layer 1: explicit aligned bias add; b1 row also plants the constant-1
    # lane at column `hidden` that carries b2/b3 through the next matmuls.
    h1 = jnp.maximum(
        jnp.dot(x, w1, preferred_element_type=jnp.float32) + b1, 0.0)
    # Layers 2/3: contract over K=32 (nonzero lanes only); biases ride in as
    # row `hidden` of the weight sections via the constant-1 lane.
    h2 = jnp.maximum(
        jnp.dot(h1[:, :h_pad], w2, preferred_element_type=jnp.float32), 0.0)
    out = jnp.dot(h2[:, :h_pad], w3, preferred_element_type=jnp.float32)
    o_ref[...] = out.astype(o_ref.dtype)


# ---------------------------------------------------------- param packing --
def pack_params(w1, b1, w2, b2, w3, b3):
    """Packs weights/biases into one small lane-aligned (rows, 128) f32 slab."""
    state_size, hidden = w1.shape
    action_size = w3.shape[1]
    assert hidden + 1 <= LANE and action_size <= LANE
    s_rows = int(_round_up(state_size, SUBLANE))        # 8
    h_pad = int(_round_up(hidden + 1, SUBLANE))         # 32 (24 + bias row)

    rows = s_rows + SUBLANE + 2 * h_pad                  # 80
    slab = jnp.zeros((rows, LANE), jnp.float32)

    # Layer 1 weights (column `hidden` stays 0: the constant-1 comes from b1).
    slab = slab.at[0:state_size, 0:hidden].set(w1)
    # b1 row (aligned) + constant-1 lane at column `hidden`.
    b1_off = s_rows
    slab = slab.at[b1_off, 0:hidden].set(b1.reshape(-1))
    slab = slab.at[b1_off, hidden].set(1.0)
    # Layer 2: W2 plus b2 folded in as row `hidden`; [hidden, hidden] = 1 keeps
    # the constant-1 lane alive through ReLU.
    w2_off = s_rows + SUBLANE
    slab = slab.at[w2_off:w2_off + hidden, 0:hidden].set(w2)
    slab = slab.at[w2_off + hidden, 0:hidden].set(b2.reshape(-1))
    slab = slab.at[w2_off + hidden, hidden].set(1.0)
    # Layer 3: W3 plus b3 folded in as row `hidden`.
    w3_off = w2_off + h_pad
    slab = slab.at[w3_off:w3_off + hidden, 0:action_size].set(w3)
    slab = slab.at[w3_off + hidden, 0:action_size].set(b3.reshape(-1))

    meta = dict(state_size=state_size, action_size=action_size,
                s_rows=s_rows, h_pad=h_pad)
    return slab, meta


# ----------------------------------------------------------------- wrapper --
@partial(jax.jit, static_argnames=(
    "state_size", "action_size", "s_rows", "h_pad", "block_batch"))
def mlp_forward(x, slab, *, state_size, action_size, s_rows, h_pad,
                block_batch=1024):
    """Fused-jit Pallas MLP forward.

    x:    (batch, state_size) float32
    slab: packed parameter slab from pack_params()
    returns (batch, action_size) float32
    """
    batch = x.shape[0]
    x = x.astype(jnp.float32)

    # Batch tile: multiple of 8, capped at block_batch, and capped at ~half the
    # batch so there are >= 2 grid steps when possible -> v7x can shard the
    # "parallel" batch axis across its two TensorCores (harmless on v5e/v6e).
    half = int(_round_up(pl.cdiv(batch, 2), SUBLANE))
    tb = int(min(block_batch, max(SUBLANE, half)))
    grid = (pl.cdiv(batch, tb),)

    out = pl.pallas_call(
        partial(_mlp_kernel, state_size=state_size, s_rows=s_rows, h_pad=h_pad),
        out_shape=jax.ShapeDtypeStruct((batch, LANE), jnp.float32),
        grid=grid,
        in_specs=[
            # x: batch-tiled, last dim == full array dim; ragged last block is
            # handled by clipped DMAs (garbage rows are never written back).
            pl.BlockSpec((tb, state_size), lambda i: (i, 0)),
            # Parameter slab: constant index_map -> VMEM-resident across steps.
            pl.BlockSpec(slab.shape, lambda i: (0, 0)),
        ],
        # Lane-dense (tb, 128) output block -> unmasked vector stores.
        out_specs=pl.BlockSpec((tb, LANE), lambda i: (i, 0)),
        compiler_params=pltpu.CompilerParams(
            dimension_semantics=("parallel",)),
    )(x, slab)

    # TODO(synk): for eval batches >> 1e5 the 128-wide writeback (64x useful
    # data at action_size=2) becomes the dominant HBM traffic; switch the out
    # BlockSpec last dim to action_size there.  Fine at DQN batch sizes.
    return out[:, :action_size]


# -------------------------------------------------------------------- init --
def init_params(key, state_size, action_size, hidden=24):
    """Deterministic parameter init (uniform, PyTorch-Linear-style bounds)."""
    ks = jax.random.split(key, 6)

    def linear_init(kw, kb, fan_in, fan_out):
        bound = 1.0 / jnp.sqrt(jnp.float32(fan_in))
        w = jax.random.uniform(kw, (fan_in, fan_out), jnp.float32, -bound, bound)
        b = jax.random.uniform(kb, (1, fan_out), jnp.float32, -bound, bound)
        return w, b

    w1, b1 = linear_init(ks[0], ks[1], state_size, hidden)
    w2, b2 = linear_init(ks[2], ks[3], hidden, hidden)
    w3, b3 = linear_init(ks[4], ks[5], hidden, action_size)
    return {"w1": w1, "b1": b1, "w2": w2, "b2": b2, "w3": w3, "b3": b3}


def reference_forward(x, p):
    hp = jax.lax.Precision.HIGHEST   # pin f32 precision for the check
    h1 = jnp.maximum(jnp.dot(x, p["w1"], precision=hp) + p["b1"], 0.0)
    h2 = jnp.maximum(jnp.dot(h1, p["w2"], precision=hp) + p["b2"], 0.0)
    return jnp.dot(h2, p["w3"], precision=hp) + p["b3"]


# -------------------------------------------------------------------- main --
if __name__ == "__main__":
    # CartPole-like sizes: state_size=4, action_size=2.
    state_size, action_size = 4, 2

    key = jax.random.PRNGKey(0)
    k_params, k_x1, k_x2 = jax.random.split(key, 3)
    params = init_params(k_params, state_size, action_size)
    slab, meta = pack_params(params["w1"], params["b1"],
                             params["w2"], params["b2"],
                             params["w3"], params["b3"])

    # Small single-env-style batch.
    x_small = jax.random.normal(k_x1, (8, state_size), jnp.float32)
    out_small = mlp_forward(x_small, slab, **meta)
    out_small = jax.block_until_ready(out_small)
    ref_small = reference_forward(x_small, params)
    assert out_small.shape == (8, action_size)
    assert jnp.allclose(out_small, ref_small, atol=2e-5, rtol=2e-5), \
        "small-batch mismatch vs reference"

    # Ragged replay-style batch: exercises the batch grid + partial last block.
    x_big = jax.random.normal(k_x2, (300, state_size), jnp.float32)
    out_big = mlp_forward(x_big, slab, **meta)
    out_big = jax.block_until_ready(out_big)
    ref_big = reference_forward(x_big, params)
    assert out_big.shape == (300, action_size)
    assert jnp.allclose(out_big, ref_big, atol=2e-5, rtol=2e-5), \
        "large-batch mismatch vs reference"

    # TODO(synk): the PyTorch module's train_step / Adam optimizer is training
    # logic, not part of the forward pass, and is not implemented here.
    print("KERNEL_OK")
</pallas_src>

<mosaic_0001>
module attributes {stable_mosaic.version = 11 : i64} {
  func.func @_mlp_kernel(%arg0: i32, %arg1: memref<8x4xf32, #tpu.memory_space<vmem>>, %arg2: memref<80x128xf32, #tpu.memory_space<vmem>>, %arg3: memref<8x128xf32, #tpu.memory_space<vmem>>) attributes {dimension_semantics = [#tpu.dimension_semantics<parallel>], iteration_bounds = array<i64: 1>, scalar_prefetch = 0 : i64, scratch_operands = 0 : i64, tpu.core_type = #tpu.core_type<tc>, window_params = [{transform_indices = @transform_0, window_bounds = array<i64: 8, 4>}, {pipeline_mode = #tpu.pipeline_mode<synchronous>, transform_indices = @transform_1, window_bounds = array<i64: 80, 128>}, {transform_indices = @transform_2, window_bounds = array<i64: 8, 128>}]} {
    %c0 = arith.constant 0 : index
    %c0_0 = arith.constant 0 : index
    %0 = vector.load %arg1[%c0, %c0_0] : memref<8x4xf32, #tpu.memory_space<vmem>>, vector<8x4xf32>
    %c0_1 = arith.constant 0 : index
    %c0_2 = arith.constant 0 : index
    %1 = vector.load %arg2[%c0_1, %c0_2] : memref<80x128xf32, #tpu.memory_space<vmem>>, vector<4x128xf32>
    %c8 = arith.constant 8 : index
    %c0_3 = arith.constant 0 : index
    %2 = vector.load %arg2[%c8, %c0_3] : memref<80x128xf32, #tpu.memory_space<vmem>>, vector<1x128xf32>
    %c16 = arith.constant 16 : index
    %c0_4 = arith.constant 0 : index
    %3 = vector.load %arg2[%c16, %c0_4] : memref<80x128xf32, #tpu.memory_space<vmem>>, vector<32x128xf32>
    %c48 = arith.constant 48 : index
    %c0_5 = arith.constant 0 : index
    %4 = vector.load %arg2[%c48, %c0_5] : memref<80x128xf32, #tpu.memory_space<vmem>>, vector<32x128xf32>
    %cst = arith.constant dense<0.000000e+00> : vector<8x128xf32>
    %5 = tpu.matmul %0, %1, %cst {dimension_numbers = #tpu.dot_dimension_numbers<[1], [0], [0], [1], [0, 0, 1, 1], [], []>} : vector<8x4xf32>, vector<4x128xf32>, vector<8x128xf32> -> vector<8x128xf32>
    %6 = vector.broadcast %2 : vector<1x128xf32> to vector<8x128xf32>
    %7 = arith.addf %5, %6 : vector<8x128xf32>
    %cst_6 = arith.constant 0.000000e+00 : f32
    %8 = vector.broadcast %cst_6 : f32 to vector<8x128xf32>
    %9 = arith.maximumf %7, %8 : vector<8x128xf32>
    %10 = vector.extract_strided_slice %9 {offsets = [0, 0], sizes = [8, 32], strides = [1, 1]} : vector<8x128xf32> to vector<8x32xf32>
    %cst_7 = arith.constant dense<0.000000e+00> : vector<8x128xf32>
    %11 = tpu.matmul %10, %3, %cst_7 {dimension_numbers = #tpu.dot_dimension_numbers<[1], [0], [0], [1], [0, 0, 1, 1], [], []>} : vector<8x32xf32>, vector<32x128xf32>, vector<8x128xf32> -> vector<8x128xf32>
    %cst_8 = arith.constant 0.000000e+00 : f32
    %12 = vector.broadcast %cst_8 : f32 to vector<8x128xf32>
    %13 = arith.maximumf %11, %12 : vector<8x128xf32>
    %14 = vector.extract_strided_slice %13 {offsets = [0, 0], sizes = [8, 32], strides = [1, 1]} : vector<8x128xf32> to vector<8x32xf32>
    %cst_9 = arith.constant dense<0.000000e+00> : vector<8x128xf32>
    %15 = tpu.matmul %14, %4, %cst_9 {dimension_numbers = #tpu.dot_dimension_numbers<[1], [0], [0], [1], [0, 0, 1, 1], [], []>} : vector<8x32xf32>, vector<32x128xf32>, vector<8x128xf32> -> vector<8x128xf32>
    %c0_10 = arith.constant 0 : index
    %c0_11 = arith.constant 0 : index
    %16 = vector.load %arg3[%c0_10, %c0_11] : memref<8x128xf32, #tpu.memory_space<vmem>>, vector<8x128xf32>
    tpu.vector_store %arg3[%c0_10, %c0_11], %15 {strides = array<i32>} : memref<8x128xf32, #tpu.memory_space<vmem>>, vector<8x128xf32>,
    return
  }
  func.func @transform_0(%arg0: i32) -> (i32, i32) {
    %c0_i32 = arith.constant 0 : i32
    %c0_i32_0 = arith.constant 0 : i32
    return %arg0, %c0_i32 : i32, i32
  }
  func.func @transform_1(%arg0: i32) -> (i32, i32) {
    %c0_i32 = arith.constant 0 : i32
    %c0_i32_0 = arith.constant 0 : i32
    %c0_i32_1 = arith.constant 0 : i32
    return %c0_i32, %c0_i32_0 : i32, i32
  }
  func.func @transform_2(%arg0: i32) -> (i32, i32) {
    %c0_i32 = arith.constant 0 : i32
    %c0_i32_0 = arith.constant 0 : i32
    return %arg0, %c0_i32 : i32, i32
  }
}

</mosaic_0001>

<llo_original>
// kernel: mlp_forward.1
$region0: #{mlp_forward.1}
  #allocation0 [shape = 'u32[]', space=smem, size = 0x4, offset = 0x4, fixed_abs, tag = 'smem constant byte address 0x4 - core index']
  #allocation1 [shape = 'u32[72,128]{1,0:T(1,128)}', space=vmem, size = 0x9000, scoped, tag = 'internal scratch']
  %s0 = inlined_call_operand.vmem [shape: f32[8,4], index: 0, kind: input, shape index: {}]
  %s1 = inlined_call_operand.hbm [shape: f32[80,128], index: 1, kind: input, shape index: {}]
  %s2 = inlined_call_operand.vmem [shape: f32[8,128], index: 2, kind: output, shape index: {}]
  %s3 = sld [smem:[#allocation0]]
  $region22: #{mlp_forward.1} parent=0
    _
  %s5 = ssub.s32 1, %s3
  %s6 = scalar_select 0, %s5, %s3
  $region1: #{mlp_forward.1} parent=0
    #allocation2 [shape = 'u8[40960]{0}', space=vmem, size = 0xa000, scoped, tag = 'input window, operand 1, single buffered']
    #allocation3 [shape = 's32[1]{0}', space=sflag, size = 0x4, scoped, tag = 'scoped memory for mlp_forward.1']
    %7 = vsyncpa [#allocation3], 0
    // Predicated region
    $region2: #{mlp_forward.1} parent=1 // pred_check
      _
    $region3: #{mlp_forward.1} parent=1 // pred_check_branch
      %9 = sbr.rel (0) target = $region5
    $region4: #{mlp_forward.1} parent=1 // pred_region
      _
    $region5: #{mlp_forward.1} parent=1 // pred_fallthru
      _
    // Predicated region
    $region6: #{mlp_forward.1} parent=1 // pred_check
      _
    $region7: #{mlp_forward.1} parent=1 // pred_check_branch
      %11 = sbr.rel (0) target = $region9
    $region8: #{mlp_forward.1} parent=1 // pred_region
      %13 = vsyncadd [#allocation3], 0
      %s14 = sshll.u32 %s1, 4
      %s15 = int_to_ptr.hbm [resolvable:$true] %s14
      %s16 = sshll.u32 [#allocation2], 4
      %s17 = int_to_ptr.vmem [resolvable:$true] %s16
      %22 = dma.hbm_to_vmem [thread:$0]  %s15, 1280, %s17, [#allocation3], 128, 128, 8
    $region9: #{mlp_forward.1} parent=1 // pred_fallthru
      _
    // Predicated region
    $region10: #{mlp_forward.1} parent=1 // pred_check
      _
    $region11: #{mlp_forward.1} parent=1 // pred_check_branch
      %24 = sbr.rel (0) target = $region13
    $region12: #{mlp_forward.1} parent=1 // pred_region
      %26 = dma.done [#allocation3], 1280
    $region13: #{mlp_forward.1} parent=1 // pred_fallthru
      _
    %v27 = vld [vmem:[%s0] sm:$0xff]
    %v28 = vld [vmem:[#allocation2] sm:$0xf]
    %v29 = vld [vmem:[#allocation2 + $0x8] sm:$0x1]
    %v30 = vld [vmem:[#allocation2 + $0x10] sm:$0xff]
    %v31 = vld [vmem:[#allocation2 + $0x18] sm:$0xff]
    %v32 = vld [vmem:[#allocation2 + $0x20] sm:$0xff]
    %v33 = vld [vmem:[#allocation2 + $0x28] sm:$0xff]
    %v34 = vld [vmem:[#allocation2 + $0x30] sm:$0xff]
    %v35 = vld [vmem:[#allocation2 + $0x38] sm:$0xff]
    %v36 = vld [vmem:[#allocation2 + $0x40] sm:$0xff]
    %v37 = vld [vmem:[#allocation2 + $0x48] sm:$0xff]
    %v38 = vperm.slane %v29, 0
    %vm39 = vcmask 31744
    %v41 = vsel %vm39, %v27, 0
    %vm43 = vcmask 1043456
    %v45 = vsel %vm43, %v28, 0
    %47 = vmatpush.msra.mxu0 0.0
    %48 = vmatpush.msra.mxu0 0.0
    %49 = vmatpush.msra.mxu0 0.0
    %50 = vmatpush.msra.mxu0 0.0
    %51 = vmatpush.msra.mxu0 0.0
    %52 = vmatpush.msra.mxu0 0.0
    %53 = vmatpush.msra.mxu0 0.0
    %54 = vmatpush.msra.mxu0 0.0
    %55 = vmatpush.msra.mxu0 0.0
    %56 = vmatpush.msra.mxu0 0.0
    %57 = vmatpush.msra.mxu0 0.0
    %58 = vmatpush.msra.mxu0 0.0
    %59 = vmatpush.msra.mxu0 0.0
    %60 = vmatpush.msra.mxu0 0.0
    %61 = vmatpush.msra.mxu0 0.0
    %62 = vmatpush.msra.mxu0 %v45
    %63 = vmatmul.f32.gmra.mxu0 %v41
    %v64 = vpop.f32.mrf.mxu0
    %v65 = vadd.f32 %v38, %v64
    %66 = vdwg.mxu0
    %v67 = vmax.f32 %v65, 0.0
    %vm68 = vcmask 261120
    %v70 = vsel %vm68, %v67, 0
    %72 = vmatpush.msra.mxu0 0.0
    %73 = vmatpush.msra.mxu0 0.0
    %74 = vmatpush.msra.mxu0 0.0
    %75 = vmatpush.msra.mxu0 0.0
    %76 = vmatpush.msra.mxu0 0.0
    %77 = vmatpush.msra.mxu0 0.0
    %78 = vmatpush.msra.mxu0 0.0
    %79 = vmatpush.msra.mxu0 0.0
    %80 = vmatpush.msra.mxu0 0.0
    %81 = vmatpush.msra.mxu0 0.0
    %82 = vmatpush.msra.mxu0 0.0
    %83 = vmatpush.msra.mxu0 0.0
    %84 = vmatpush.msra.mxu0 %v33
    %85 = vmatpush.msra.mxu0 %v32
    %86 = vmatpush.msra.mxu0 %v31
    %87 = vmatpush.msra.mxu0 %v30
    %88 = vmatmul.f32.gmra.mxu0 %v70
    %v89 = vpop.f32.mrf.mxu0
    %v90 = vadd.f32 0.0, %v89
    %91 = vdwg.mxu0
    %v92 = vmax.f32 %v90, 0.0
    %v94 = vsel %vm68, %v92, 0
    %96 = vmatpush.msra.mxu0 0.0
    %97 = vmatpush.msra.mxu0 0.0
    %98 = vmatpush.msra.mxu0 0.0
    %99 = vmatpush.msra.mxu0 0.0
    %100 = vmatpush.msra.mxu0 0.0
    %101 = vmatpush.msra.mxu0 0.0
    %102 = vmatpush.msra.mxu0 0.0
    %103 = vmatpush.msra.mxu0 0.0
    %104 = vmatpush.msra.mxu0 0.0
    %105 = vmatpush.msra.mxu0 0.0
    %106 = vmatpush.msra.mxu0 0.0
    %107 = vmatpush.msra.mxu0 0.0
    %108 = vmatpush.msra.mxu0 %v37
    %109 = vmatpush.msra.mxu0 %v36
    %110 = vmatpush.msra.mxu0 %v35
    %111 = vmatpush.msra.mxu0 %v34
    %112 = vmatmul.f32.gmra.mxu0 %v94
    %v113 = vpop.f32.mrf.mxu0
    %v114 = vadd.f32 0.0, %v113
    %115 = vdwg.mxu0
    %116 = vst [vmem:[%s2] sm:$0xff] %v114
    // Predicated region
    $region14: #{mlp_forward.1} parent=1 // pred_check
      _
    $region15: #{mlp_forward.1} parent=1 // pred_check_branch
      %118 = sbr.rel (0) target = $region17
    $region16: #{mlp_forward.1} parent=1 // pred_region
      _
    $region17: #{mlp_forward.1} parent=1 // pred_fallthru
      _
    // Predicated region
    $region18: #{mlp_forward.1} parent=1 // pred_check
      _
    $region19: #{mlp_forward.1} parent=1 // pred_check_branch
      %120 = sbr.rel (0) target = $region21
    $region20: #{mlp_forward.1} parent=1 // pred_region
      _
    $region21: #{mlp_forward.1} parent=1 // pred_fallthru
      _
    %121 = vsyncpa [#allocation3], 1

</llo_original>
